<compile_context>
chip_gen: v6e
topology: v6e:2x2x1
jax: 0.10.0
libtpu: 0.0.40
codegen_flags: <defaults>
</compile_context>

<pallas_src>
import jax
import jax.numpy as jnp
from jax import lax
from jax.experimental import pallas as pl
from jax.experimental.pallas import tpu as pltpu

# ---------------- problem sizes (small, TPU-friendly) ----------------
B = 2            # batch
N = 16           # sequence length
EMB = 128        # emb_size
H = 8            # num_heads
D = EMB // H     # head dim
HN = H * N


def _mha_kernel(x_ref, wqkv_ref, bqkv_ref, wp_ref, bp_ref,
                hmask_ref, onehot_ref, spread_ref, o_ref):
    """One batch per grid step: fused QKV projection, all-heads attention via block-diagonal
    full-width matmuls (bf16 MXU operands, f32 accumulation), single output projection."""
    f32 = jnp.float32
    bf16 = jnp.bfloat16

    x = x_ref[...]                                                   # (N, E) f32

    # ---- fused Q/K/V projection: one (N, E) @ (E, 3E) bf16 MXU matmul ----
    qkv = jnp.dot(x.astype(bf16), wqkv_ref[...],
                  preferred_element_type=f32) + bqkv_ref[...]        # (N, 3E) f32
    q = qkv[:, 0 * EMB:1 * EMB]          # 128-lane-aligned slices (full vregs)
    k = qkv[:, 1 * EMB:2 * EMB]
    v = qkv[:, 2 * EMB:3 * EMB]          # already pre-scaled by 1/sqrt(E) via weights

    # ---- block-diagonal "all heads at once" K/V operands ----
    #   kbig[h*N + j, e] = k[j, e] if feature e belongs to head h else 0   (same for vbig)
    # Replication is a sublane concatenate (cheap vld/vst the LLO can hide), NOT an MXU matmul;
    # the mask is a hoisted host constant.  Mask multiply in f32 (no bf16 VALU on v5e),
    # cast only at the MXU inputs.
    hmask = hmask_ref[...]                                           # (H*N, E) f32
    kbig = (jnp.concatenate([k] * H, axis=0) * hmask).astype(bf16)   # (H*N, E) bf16
    vbig = (jnp.concatenate([v] * H, axis=0) * hmask).astype(bf16)   # (H*N, E) bf16

    # energy[i, h*N + j] = <q_h[i], k_h[j]> — one (N,E) x (H*N,E)^T bf16 MXU matmul
    energy = lax.dot_general(q.astype(bf16), kbig, (((1,), (1,)), ((), ())),
                             preferred_element_type=f32)             # (N, H*N) f32

    # ---- per-head softmax (f32 VPU math) ----
    # The global per-row max is constant within each head, so it cancels in the per-head
    # softmax and only provides numerical stability; the denominator clamp below turns the
    # pathological "one head far under the row max" case into zeros instead of inf/NaN.
    m = jnp.max(energy, axis=-1, keepdims=True)
    p = jnp.exp(energy - m)
    # Per-head denominators via compact one-hot matmuls: (N,HN)@(HN,H) then (N,H)@(H,HN).
    denom_c = jnp.dot(p, onehot_ref[...], preferred_element_type=f32)       # (N, H)
    denom = jnp.dot(denom_c, spread_ref[...], preferred_element_type=f32)   # (N, H*N)
    denom = jnp.maximum(denom, 1e-20)
    att = p * pl.reciprocal(denom, approx=True)       # EUP vrcp (otherwise-idle slot)

    # out[i, e] = sum_j att_{head(e)}[i, j] * v[j, e] — heads re-merged for free
    ctx = jnp.dot(att.astype(bf16), vbig, preferred_element_type=f32)       # (N, E) f32

    # ---- output projection ----
    out = jnp.dot(ctx.astype(bf16), wp_ref[...],
                  preferred_element_type=f32) + bp_ref[...]                 # (N, E)
    o_ref[...] = out.astype(o_ref.dtype)


def multi_head_attention(x, wq, bq, wk, bk, wv, bv, wp, bp):
    B_, N_, E_ = x.shape
    assert (B_, N_, E_) == (B, N, EMB)
    scale = E_ ** 0.5
    bf16 = jnp.bfloat16

    # Fold the post-softmax 1/sqrt(E) scale into the V projection (exact linear fold),
    # pack Q|K|V into a single (E, 3E) projection, and store matmul weights as bf16
    # (halves weight HBM traffic; accumulation stays f32 in-kernel).
    w_qkv = jnp.concatenate([wq, wk, wv / scale], axis=1).astype(bf16)    # (E, 3E) bf16
    b_qkv = jnp.concatenate([bq, bk, bv / scale], axis=1)                 # (1, 3E) f32
    wp_b = wp.astype(bf16)                                                # (E, E)  bf16

    # Host-side structure constants (compile-time; ride the BlockSpec DMA pipeline).
    head_of_row = jnp.arange(HN) // N                                     # head of row h*N+j
    head_of_col = jnp.arange(E_) // D                                     # head owning feature e
    head_mask = (head_of_row[:, None] == head_of_col[None, :]).astype(jnp.float32)  # (HN, E)
    onehot = (head_of_row[:, None] == jnp.arange(H)[None, :]).astype(jnp.float32)   # (HN, H)
    spread = onehot.T                                                      # (H, HN)

    x2 = x.reshape(B_ * N_, E_)

    out2 = pl.pallas_call(
        _mha_kernel,
        out_shape=jax.ShapeDtypeStruct((B_ * N_, E_), x.dtype),
        grid_spec=pltpu.PrefetchScalarGridSpec(
            num_scalar_prefetch=0,
            grid=(B_,),   # one batch per step -> megacore-sharded on v7x (2 TCs)
            in_specs=[
                pl.BlockSpec((N_, E_), lambda b: (b, 0)),        # x        (per-batch block)
                pl.BlockSpec((E_, 3 * E_), lambda b: (0, 0)),    # W_qkv    (resident across steps)
                pl.BlockSpec((1, 3 * E_), lambda b: (0, 0)),     # b_qkv
                pl.BlockSpec((E_, E_), lambda b: (0, 0)),        # W_proj
                pl.BlockSpec((1, E_), lambda b: (0, 0)),         # b_proj
                pl.BlockSpec((HN, E_), lambda b: (0, 0)),        # head_mask
                pl.BlockSpec((HN, H), lambda b: (0, 0)),         # onehot_head
                pl.BlockSpec((H, HN), lambda b: (0, 0)),         # spread_head
            ],
            out_specs=pl.BlockSpec((N_, E_), lambda b: (b, 0)),
        ),
        compiler_params=pltpu.CompilerParams(
            dimension_semantics=("parallel",)),
    )(x2, w_qkv, b_qkv, wp_b, bp, head_mask, onehot, spread)
    return out2.reshape(B_, N_, E_)


def reference(x, wq, bq, wk, bk, wv, bv, wp, bp):
    """Pure-JAX f32 reference mirroring the PyTorch forward."""
    q = x @ wq + bq
    k = x @ wk + bk
    v = x @ wv + bv
    split = lambda t: t.reshape(B, N, H, D).transpose(0, 2, 1, 3)   # b h n d
    q, k, v = split(q), split(k), split(v)
    energy = jnp.einsum('bhqd,bhkd->bhqk', q, k)
    att = jax.nn.softmax(energy, axis=-1) / (EMB ** 0.5)
    out = jnp.einsum('bhal,bhlv->bhav', att, v)
    out = out.transpose(0, 2, 1, 3).reshape(B, N, EMB)
    return out @ wp + bp


if __name__ == "__main__":
    key = jax.random.PRNGKey(0)
    ks = jax.random.split(key, 9)
    bound = 1.0 / (EMB ** 0.5)
    u = lambda kk, shape: jax.random.uniform(kk, shape, jnp.float32, -bound, bound)

    x = jax.random.normal(ks[0], (B, N, EMB), jnp.float32)
    wq, bq = u(ks[1], (EMB, EMB)), u(ks[2], (1, EMB))
    wk, bk = u(ks[3], (EMB, EMB)), u(ks[4], (1, EMB))
    wv, bv = u(ks[5], (EMB, EMB)), u(ks[6], (1, EMB))
    wp, bp = u(ks[7], (EMB, EMB)), u(ks[8], (1, EMB))

    out = multi_head_attention(x, wq, bq, wk, bk, wv, bv, wp, bp)
    out = jax.block_until_ready(out)

    ref = reference(x, wq, bq, wk, bk, wv, bv, wp, bp)
    assert out.shape == (B, N, EMB)
    # Tolerance covers bf16 MXU operands (f32 accumulation) + the approximate EUP reciprocal:
    # bf16 rounding of the attention logits before exp dominates; observed error vs the pure
    # f32 reference is ~1e-3 absolute on outputs of magnitude ~1e-1.
    assert jnp.allclose(out, ref, atol=1e-2, rtol=1e-2), "mismatch vs pure-JAX reference"
    assert bool(jnp.all(jnp.isfinite(out))), "non-finite values in kernel output"
    print("KERNEL_OK")
</pallas_src>

<mosaic_0001>
module attributes {stable_mosaic.version = 11 : i64} {
  func.func @_mha_kernel(%arg0: i32, %arg1: memref<16x128xf32, #tpu.memory_space<vmem>>, %arg2: memref<128x384xbf16, #tpu.memory_space<vmem>>, %arg3: memref<1x384xf32, #tpu.memory_space<vmem>>, %arg4: memref<128x128xbf16, #tpu.memory_space<vmem>>, %arg5: memref<1x128xf32, #tpu.memory_space<vmem>>, %arg6: memref<128x128xf32, #tpu.memory_space<vmem>>, %arg7: memref<128x8xf32, #tpu.memory_space<vmem>>, %arg8: memref<8x128xf32, #tpu.memory_space<vmem>>, %arg9: memref<16x128xf32, #tpu.memory_space<vmem>>) attributes {dimension_semantics = [#tpu.dimension_semantics<parallel>], iteration_bounds = array<i64: 2>, scalar_prefetch = 0 : i64, scratch_operands = 0 : i64, tpu.core_type = #tpu.core_type<tc>, window_params = [{transform_indices = @transform_0, window_bounds = array<i64: 16, 128>}, {pipeline_mode = #tpu.pipeline_mode<synchronous>, transform_indices = @transform_1, window_bounds = array<i64: 128, 384>}, {pipeline_mode = #tpu.pipeline_mode<synchronous>, transform_indices = @transform_2, window_bounds = array<i64: 1, 384>}, {pipeline_mode = #tpu.pipeline_mode<synchronous>, transform_indices = @transform_3, window_bounds = array<i64: 128, 128>}, {pipeline_mode = #tpu.pipeline_mode<synchronous>, transform_indices = @transform_4, window_bounds = array<i64: 1, 128>}, {pipeline_mode = #tpu.pipeline_mode<synchronous>, transform_indices = @transform_5, window_bounds = array<i64: 128, 128>}, {pipeline_mode = #tpu.pipeline_mode<synchronous>, transform_indices = @transform_6, window_bounds = array<i64: 128, 8>}, {pipeline_mode = #tpu.pipeline_mode<synchronous>, transform_indices = @transform_7, window_bounds = array<i64: 8, 128>}, {transform_indices = @transform_8, window_bounds = array<i64: 16, 128>}]} {
    %c0 = arith.constant 0 : index
    %c0_0 = arith.constant 0 : index
    %0 = vector.load %arg1[%c0, %c0_0] : memref<16x128xf32, #tpu.memory_space<vmem>>, vector<16x128xf32>
    %1 = arith.truncf %0 : vector<16x128xf32> to vector<16x128xbf16>
    %c0_1 = arith.constant 0 : index
    %c0_2 = arith.constant 0 : index
    %2 = vector.load %arg2[%c0_1, %c0_2] : memref<128x384xbf16, #tpu.memory_space<vmem>>, vector<128x384xbf16>
    %cst = arith.constant dense<0.000000e+00> : vector<16x384xf32>
    %3 = tpu.matmul %1, %2, %cst {dimension_numbers = #tpu.dot_dimension_numbers<[1], [0], [0], [1], [0, 0, 1, 1], [], []>} : vector<16x128xbf16>, vector<128x384xbf16>, vector<16x384xf32> -> vector<16x384xf32>
    %c0_3 = arith.constant 0 : index
    %c0_4 = arith.constant 0 : index
    %4 = vector.load %arg3[%c0_3, %c0_4] : memref<1x384xf32, #tpu.memory_space<vmem>>, vector<1x384xf32>
    %5 = vector.broadcast %4 : vector<1x384xf32> to vector<16x384xf32>
    %6 = arith.addf %3, %5 : vector<16x384xf32>
    %7 = vector.extract_strided_slice %6 {offsets = [0, 0], sizes = [16, 128], strides = [1, 1]} : vector<16x384xf32> to vector<16x128xf32>
    %8 = vector.extract_strided_slice %6 {offsets = [0, 128], sizes = [16, 128], strides = [1, 1]} : vector<16x384xf32> to vector<16x128xf32>
    %9 = vector.extract_strided_slice %6 {offsets = [0, 256], sizes = [16, 128], strides = [1, 1]} : vector<16x384xf32> to vector<16x128xf32>
    %c0_5 = arith.constant 0 : index
    %c0_6 = arith.constant 0 : index
    %10 = vector.load %arg6[%c0_5, %c0_6] : memref<128x128xf32, #tpu.memory_space<vmem>>, vector<128x128xf32>
    %11 = tpu.concatenate %8, %8, %8, %8, %8, %8, %8, %8 in 0 : vector<16x128xf32>, vector<16x128xf32>, vector<16x128xf32>, vector<16x128xf32>, vector<16x128xf32>, vector<16x128xf32>, vector<16x128xf32>, vector<16x128xf32> -> vector<128x128xf32>
    %12 = arith.mulf %11, %10 : vector<128x128xf32>
    %13 = arith.truncf %12 : vector<128x128xf32> to vector<128x128xbf16>
    %14 = tpu.concatenate %9, %9, %9, %9, %9, %9, %9, %9 in 0 : vector<16x128xf32>, vector<16x128xf32>, vector<16x128xf32>, vector<16x128xf32>, vector<16x128xf32>, vector<16x128xf32>, vector<16x128xf32>, vector<16x128xf32> -> vector<128x128xf32>
    %15 = arith.mulf %14, %10 : vector<128x128xf32>
    %16 = arith.truncf %15 : vector<128x128xf32> to vector<128x128xbf16>
    %17 = arith.truncf %7 : vector<16x128xf32> to vector<16x128xbf16>
    %cst_7 = arith.constant dense<0.000000e+00> : vector<16x128xf32>
    %18 = tpu.matmul %17, %13, %cst_7 {dimension_numbers = #tpu.dot_dimension_numbers<[1], [1], [0], [0], [0, 0, 1, 0], [], []>} : vector<16x128xbf16>, vector<128x128xbf16>, vector<16x128xf32> -> vector<16x128xf32>
    %cst_8 = arith.constant dense<0xFF800000> : vector<16xf32>
    %19 = vector.multi_reduction <maximumf>, %18, %cst_8 [1] : vector<16x128xf32> to vector<16xf32>
    %20 = vector.shape_cast %19 : vector<16xf32> to vector<16x1xf32>
    %21 = vector.broadcast %20 : vector<16x1xf32> to vector<16x128xf32>
    %22 = arith.subf %18, %21 : vector<16x128xf32>
    %23 = math.exp %22 : vector<16x128xf32>
    %c0_9 = arith.constant 0 : index
    %c0_10 = arith.constant 0 : index
    %24 = vector.load %arg7[%c0_9, %c0_10] : memref<128x8xf32, #tpu.memory_space<vmem>>, vector<128x8xf32>
    %cst_11 = arith.constant dense<0.000000e+00> : vector<16x8xf32>
    %25 = tpu.matmul %23, %24, %cst_11 {dimension_numbers = #tpu.dot_dimension_numbers<[1], [0], [0], [1], [0, 0, 1, 1], [], []>} : vector<16x128xf32>, vector<128x8xf32>, vector<16x8xf32> -> vector<16x8xf32>
    %c0_12 = arith.constant 0 : index
    %c0_13 = arith.constant 0 : index
    %26 = vector.load %arg8[%c0_12, %c0_13] : memref<8x128xf32, #tpu.memory_space<vmem>>, vector<8x128xf32>
    %cst_14 = arith.constant dense<0.000000e+00> : vector<16x128xf32>
    %27 = tpu.matmul %25, %26, %cst_14 {dimension_numbers = #tpu.dot_dimension_numbers<[1], [0], [0], [1], [0, 0, 1, 1], [], []>} : vector<16x8xf32>, vector<8x128xf32>, vector<16x128xf32> -> vector<16x128xf32>
    %cst_15 = arith.constant 9.99999968E-21 : f32
    %28 = vector.broadcast %cst_15 : f32 to vector<16x128xf32>
    %29 = arith.maximumf %27, %28 : vector<16x128xf32>
    %30 = tpu.reciprocal %29 {approx = true} : vector<16x128xf32> -> vector<16x128xf32>
    %31 = arith.mulf %23, %30 : vector<16x128xf32>
    %32 = arith.truncf %31 : vector<16x128xf32> to vector<16x128xbf16>
    %cst_16 = arith.constant dense<0.000000e+00> : vector<16x128xf32>
    %33 = tpu.matmul %32, %16, %cst_16 {dimension_numbers = #tpu.dot_dimension_numbers<[1], [0], [0], [1], [0, 0, 1, 1], [], []>} : vector<16x128xbf16>, vector<128x128xbf16>, vector<16x128xf32> -> vector<16x128xf32>
    %34 = arith.truncf %33 : vector<16x128xf32> to vector<16x128xbf16>
    %c0_17 = arith.constant 0 : index
    %c0_18 = arith.constant 0 : index
    %35 = vector.load %arg4[%c0_17, %c0_18] : memref<128x128xbf16, #tpu.memory_space<vmem>>, vector<128x128xbf16>
    %cst_19 = arith.constant dense<0.000000e+00> : vector<16x128xf32>
    %36 = tpu.matmul %34, %35, %cst_19 {dimension_numbers = #tpu.dot_dimension_numbers<[1], [0], [0], [1], [0, 0, 1, 1], [], []>} : vector<16x128xbf16>, vector<128x128xbf16>, vector<16x128xf32> -> vector<16x128xf32>
    %c0_20 = arith.constant 0 : index
    %c0_21 = arith.constant 0 : index
    %37 = vector.load %arg5[%c0_20, %c0_21] : memref<1x128xf32, #tpu.memory_space<vmem>>, vector<1x128xf32>
    %38 = vector.broadcast %37 : vector<1x128xf32> to vector<16x128xf32>
    %39 = arith.addf %36, %38 : vector<16x128xf32>
    %c0_22 = arith.constant 0 : index
    %c0_23 = arith.constant 0 : index
    %40 = vector.load %arg9[%c0_22, %c0_23] : memref<16x128xf32, #tpu.memory_space<vmem>>, vector<16x128xf32>
    tpu.vector_store %arg9[%c0_22, %c0_23], %39 {strides = array<i32>} : memref<16x128xf32, #tpu.memory_space<vmem>>, vector<16x128xf32>,
    return
  }
  func.func @transform_0(%arg0: i32) -> (i32, i32) {
    %c0_i32 = arith.constant 0 : i32
    %c0_i32_0 = arith.constant 0 : i32
    return %arg0, %c0_i32 : i32, i32
  }
  func.func @transform_1(%arg0: i32) -> (i32, i32) {
    %c0_i32 = arith.constant 0 : i32
    %c0_i32_0 = arith.constant 0 : i32
    %c0_i32_1 = arith.constant 0 : i32
    return %c0_i32, %c0_i32_0 : i32, i32
  }
  func.func @transform_2(%arg0: i32) -> (i32, i32) {
    %c0_i32 = arith.constant 0 : i32
    %c0_i32_0 = arith.constant 0 : i32
    %c0_i32_1 = arith.constant 0 : i32
    return %c0_i32, %c0_i32_0 : i32, i32
  }
  func.func @transform_3(%arg0: i32) -> (i32, i32) {
    %c0_i32 = arith.constant 0 : i32
    %c0_i32_0 = arith.constant 0 : i32
    %c0_i32_1 = arith.constant 0 : i32
    return %c0_i32, %c0_i32_0 : i32, i32
  }
  func.func @transform_4(%arg0: i32) -> (i32, i32) {
    %c0_i32 = arith.constant 0 : i32
    %c0_i32_0 = arith.constant 0 : i32
    %c0_i32_1 = arith.constant 0 : i32
    return %c0_i32, %c0_i32_0 : i32, i32
  }
  func.func @transform_5(%arg0: i32) -> (i32, i32) {
    %c0_i32 = arith.constant 0 : i32
    %c0_i32_0 = arith.constant 0 : i32
    %c0_i32_1 = arith.constant 0 : i32
    return %c0_i32, %c0_i32_0 : i32, i32
  }
  func.func @transform_6(%arg0: i32) -> (i32, i32) {
    %c0_i32 = arith.constant 0 : i32
    %c0_i32_0 = arith.constant 0 : i32
    %c0_i32_1 = arith.constant 0 : i32
    return %c0_i32, %c0_i32_0 : i32, i32
  }
  func.func @transform_7(%arg0: i32) -> (i32, i32) {
    %c0_i32 = arith.constant 0 : i32
    %c0_i32_0 = arith.constant 0 : i32
    %c0_i32_1 = arith.constant 0 : i32
    return %c0_i32, %c0_i32_0 : i32, i32
  }
  func.func @transform_8(%arg0: i32) -> (i32, i32) {
    %c0_i32 = arith.constant 0 : i32
    %c0_i32_0 = arith.constant 0 : i32
    return %arg0, %c0_i32 : i32, i32
  }
}

</mosaic_0001>

<llo_original>
// kernel: tpu_custom_call.1
$region0: #{tpu_custom_call.1}
  #allocation0 [shape = 'u32[]', space=smem, size = 0x4, offset = 0x4, fixed_abs, tag = 'smem constant byte address 0x4 - core index']
  #allocation1 [shape = 'u32[144,128]{1,0:T(1,128)}', space=vmem, size = 0x12000, scoped, tag = 'internal scratch']
  %s0 = inlined_call_operand.hbm [shape: f32[32,128], index: 0, kind: input, shape index: {}]
  %s1 = inlined_call_operand.hbm [shape: bf16[128,384], index: 1, kind: input, shape index: {}]
  %s2 = inlined_call_operand.hbm [shape: f32[1,384], index: 2, kind: input, shape index: {}]
  %s3 = inlined_call_operand.hbm [shape: bf16[128,128], index: 3, kind: input, shape index: {}]
  %s4 = inlined_call_operand.vmem [shape: f32[1,128], index: 4, kind: input, shape index: {}]
  %s5 = inlined_call_operand.vmem [shape: f32[128,128], index: 5, kind: input, shape index: {}]
  %s6 = inlined_call_operand.vmem [shape: f32[128,8], index: 6, kind: input, shape index: {}]
  %s7 = inlined_call_operand.vmem [shape: f32[8,128], index: 7, kind: input, shape index: {}]
  %s8 = inlined_call_operand.hbm [shape: f32[32,128], index: 8, kind: output, shape index: {}]
  %s9 = sld [smem:[#allocation0]]
  $region81: #{tpu_custom_call.1} parent=0
    _
  %s11 = ssub.s32 1, %s9
  %s12 = scalar_select 0, %s11, %s9
  $region1: #{tpu_custom_call.1} parent=0
    #allocation2 [shape = 'u8[16384]{0}', space=vmem, size = 0x4000, scoped, tag = 'input window, operand 0']
    #allocation3 [shape = 's32[2]{0}', space=sflag, size = 0x8, scoped, tag = 'scoped memory for tpu_custom_call.1']
    #allocation4 [shape = 's32[2]{0}', space=sflag, size = 0x8, scoped, tag = 'scoped memory for tpu_custom_call.1']
    #allocation5 [shape = 'u8[98304]{0}', space=vmem, size = 0x18000, scoped, tag = 'input window, operand 1, single buffered']
    #allocation6 [shape = 's32[1]{0}', space=sflag, size = 0x4, scoped, tag = 'scoped memory for tpu_custom_call.1']
    #allocation7 [shape = 'u8[1536]{0}', space=vmem, size = 0x800, scoped, tag = 'input window, operand 2, single buffered']
    #allocation8 [shape = 'u8[32768]{0}', space=vmem, size = 0x8000, scoped, tag = 'input window, operand 3, single buffered']
    #allocation9 [shape = 's32[1]{0}', space=sflag, size = 0x4, scoped, tag = 'scoped memory for tpu_custom_call.1']
    #allocation10 [shape = 'u8[16384]{0}', space=vmem, size = 0x4000, scoped, tag = 'output window, operand 0']
    %13 = vsyncpa [#allocation3], 0
    %s14 = scalar_lea.sflag [#allocation3], 1
    %15 = vsyncpa %s14, 0
    %16 = vsyncpa [#allocation6], 0
    %17 = vsyncpa [#allocation9], 0
    %18 = vsyncpa [#allocation4], 0
    %s19 = scalar_lea.sflag [#allocation4], 1
    %20 = vsyncpa %s19, 0
    loop: start=0, step=1, limit=4
    $region2: #{tpu_custom_call.1} parent=1 // loop_pre_header
      _
    $region3: #{tpu_custom_call.1} parent=1 // loop_header
      %s22 = sphi 0, %s26
      %p23 = scmp.ge.s32.totalorder %s22, 4
      %s32 = sphi 0, %s34
      %s35 = sphi 0, %s32
      %s36 = sphi 0, %s35
      %s52 = sphi 0, %s36
      %s56 = sphi 0, %s56
      %s58 = sphi 0, %s56
      %s59 = sphi 0, %s58
      %s73 = sphi 0, %s59
      %s77 = sphi 0, %s77
      %s79 = sphi 0, %s77
      %s80 = sphi 0, %s79
      %s94 = sphi 0, %s80
      %s98 = sphi 0, %s98
      %s100 = sphi 0, %s98
      %s101 = sphi 0, %s100
      %s115 = sphi 0, %s101
      %s119 = sphi 0, %s119
      %s121 = sphi 0, %s119
      %s122 = sphi 0, %s121
      %s136 = sphi 0, %s122
      %s140 = sphi 0, %s140
      %s142 = sphi 0, %s140
      %s143 = sphi 0, %s142
      %s157 = sphi 0, %s143
      %s161 = sphi 0, %s161
      %s163 = sphi 0, %s161
      %s164 = sphi 0, %s163
      %s178 = sphi 0, %s164
      %s182 = sphi 0, %s182
      %s184 = sphi 0, %s182
      %s185 = sphi 0, %s184
      %s199 = sphi 0, %s185
      %s205 = sphi 0, %s207
      %s208 = sphi 0, %s205
      %s209 = sphi 0, %s208
      %s225 = sphi 0, %s209
    $region4: #{tpu_custom_call.1} parent=1 // loop_header_branch
      %25 = sbr.rel (%p23) target = $region8
    $region5: #{tpu_custom_call.1} parent=1 // loop_body
      %s27 = ssub.s32 %s22, 1
      %s28 = ssub.s32 %s22, 2
      %s29 = sadd.s32 %s22, 1
      %s30 = ssub.s32 %s22, %s29
      %p31 = scmp.eq.s32.totalorder %s30, 0
      %s33 = sadd.s32 %s32, 1
      %s34 = scalar_select %p31, %s32, %s33
      %p37 = pneg %p31
      %p38 = scmp.eq.s32.totalorder %s22, 1
      %p39 = por %p37, %p38
      %p40 = scmp.ne.s32.totalorder %s32, %s35
      %p41 = scmp.eq.s32.totalorder %s22, 0
      %p42 = por %p40, %p41
      %p43 = scmp.ne.s32.totalorder %s32, %s35
      %p44 = scmp.eq.s32.totalorder %s27, 1
      %p45 = por %p43, %p44
      %p46 = scmp.ne.s32.totalorder %s35, %s36
      %p47 = scmp.eq.s32.totalorder %s27, 0
      %p48 = por %p46, %p47
      %p49 = scmp.ne.s32.totalorder %s35, %s36
      %p50 = scmp.eq.s32.totalorder %s28, 1
      %p51 = por %p49, %p50
      %p53 = scmp.ne.s32.totalorder %s36, %s52
      %p54 = scmp.eq.s32.totalorder %s28, 0
      %p55 = por %p53, %p54
      %s57 = sadd.s32 %s56, 1
      %p60 = scmp.eq.s32.totalorder %s22, 1
      %p61 = scmp.ne.s32.totalorder %s56, %s58
      %p62 = scmp.eq.s32.totalorder %s22, 0
      %p63 = por %p61, %p62
      %p64 = scmp.ne.s32.totalorder %s56, %s58
      %p65 = scmp.eq.s32.totalorder %s27, 1
      %p66 = por %p64, %p65
      %p67 = scmp.ne.s32.totalorder %s58, %s59
      %p68 = scmp.eq.s32.totalorder %s27, 0
      %p69 = por %p67, %p68
      %p70 = scmp.ne.s32.totalorder %s58, %s59
      %p71 = scmp.eq.s32.totalorder %s28, 1
      %p72 = por %p70, %p71
      %p74 = scmp.ne.s32.totalorder %s59, %s73
      %p75 = scmp.eq.s32.totalorder %s28, 0
      %p76 = por %p74, %p75
      %s78 = sadd.s32 %s77, 1
      %p81 = scmp.eq.s32.totalorder %s22, 1
      %p82 = scmp.ne.s32.totalorder %s77, %s79
      %p83 = scmp.eq.s32.totalorder %s22, 0
      %p84 = por %p82, %p83
      %p85 = scmp.ne.s32.totalorder %s77, %s79
      %p86 = scmp.eq.s32.totalorder %s27, 1
      %p87 = por %p85, %p86
      %p88 = scmp.ne.s32.totalorder %s79, %s80
      %p89 = scmp.eq.s32.totalorder %s27, 0
      %p90 = por %p88, %p89
      %p91 = scmp.ne.s32.totalorder %s79, %s80
      %p92 = scmp.eq.s32.totalorder %s28, 1
      %p93 = por %p91, %p92
      %p95 = scmp.ne.s32.totalorder %s80, %s94
      %p96 = scmp.eq.s32.totalorder %s28, 0
      %p97 = por %p95, %p96
      %s99 = sadd.s32 %s98, 1
      %p102 = scmp.eq.s32.totalorder %s22, 1
      %p103 = scmp.ne.s32.totalorder %s98, %s100
      %p104 = scmp.eq.s32.totalorder %s22, 0
      %p105 = por %p103, %p104
      %p106 = scmp.ne.s32.totalorder %s98, %s100
      %p107 = scmp.eq.s32.totalorder %s27, 1
      %p108 = por %p106, %p107
      %p109 = scmp.ne.s32.totalorder %s100, %s101
      %p110 = scmp.eq.s32.totalorder %s27, 0
      %p111 = por %p109, %p110
      %p112 = scmp.ne.s32.totalorder %s100, %s101
      %p113 = scmp.eq.s32.totalorder %s28, 1
      %p114 = por %p112, %p113
      %p116 = scmp.ne.s32.totalorder %s101, %s115
      %p117 = scmp.eq.s32.totalorder %s28, 0
      %p118 = por %p116, %p117
      %s120 = sadd.s32 %s119, 1
      %p123 = scmp.eq.s32.totalorder %s22, 1
      %p124 = scmp.ne.s32.totalorder %s119, %s121
      %p125 = scmp.eq.s32.totalorder %s22, 0
      %p126 = por %p124, %p125
      %p127 = scmp.ne.s32.totalorder %s119, %s121
      %p128 = scmp.eq.s32.totalorder %s27, 1
      %p129 = por %p127, %p128
      %p130 = scmp.ne.s32.totalorder %s121, %s122
      %p131 = scmp.eq.s32.totalorder %s27, 0
      %p132 = por %p130, %p131
      %p133 = scmp.ne.s32.totalorder %s121, %s122
      %p134 = scmp.eq.s32.totalorder %s28, 1
      %p135 = por %p133, %p134
      %p137 = scmp.ne.s32.totalorder %s122, %s136
      %p138 = scmp.eq.s32.totalorder %s28, 0
      %p139 = por %p137, %p138
      %s141 = sadd.s32 %s140, 1
      %p144 = scmp.eq.s32.totalorder %s22, 1
      %p145 = scmp.ne.s32.totalorder %s140, %s142
      %p146 = scmp.eq.s32.totalorder %s22, 0
      %p147 = por %p145, %p146
      %p148 = scmp.ne.s32.totalorder %s140, %s142
      %p149 = scmp.eq.s32.totalorder %s27, 1
      %p150 = por %p148, %p149
      %p151 = scmp.ne.s32.totalorder %s142, %s143
      %p152 = scmp.eq.s32.totalorder %s27, 0
      %p153 = por %p151, %p152
      %p154 = scmp.ne.s32.totalorder %s142, %s143
      %p155 = scmp.eq.s32.totalorder %s28, 1
      %p156 = por %p154, %p155
      %p158 = scmp.ne.s32.totalorder %s143, %s157
      %p159 = scmp.eq.s32.totalorder %s28, 0
      %p160 = por %p158, %p159
      %s162 = sadd.s32 %s161, 1
      %p165 = scmp.eq.s32.totalorder %s22, 1
      %p166 = scmp.ne.s32.totalorder %s161, %s163
      %p167 = scmp.eq.s32.totalorder %s22, 0
      %p168 = por %p166, %p167
      %p169 = scmp.ne.s32.totalorder %s161, %s163
      %p170 = scmp.eq.s32.totalorder %s27, 1
      %p171 = por %p169, %p170
      %p172 = scmp.ne.s32.totalorder %s163, %s164
      %p173 = scmp.eq.s32.totalorder %s27, 0
      %p174 = por %p172, %p173
      %p175 = scmp.ne.s32.totalorder %s163, %s164
      %p176 = scmp.eq.s32.totalorder %s28, 1
      %p177 = por %p175, %p176
      %p179 = scmp.ne.s32.totalorder %s164, %s178
      %p180 = scmp.eq.s32.totalorder %s28, 0
      %p181 = por %p179, %p180
      %s183 = sadd.s32 %s182, 1
      %p186 = scmp.eq.s32.totalorder %s22, 1
      %p187 = scmp.ne.s32.totalorder %s182, %s184
      %p188 = scmp.eq.s32.totalorder %s22, 0
      %p189 = por %p187, %p188
      %p190 = scmp.ne.s32.totalorder %s182, %s184
      %p191 = scmp.eq.s32.totalorder %s27, 1
      %p192 = por %p190, %p191
      %p193 = scmp.ne.s32.totalorder %s184, %s185
      %p194 = scmp.eq.s32.totalorder %s27, 0
      %p195 = por %p193, %p194
      %p196 = scmp.ne.s32.totalorder %s184, %s185
      %p197 = scmp.eq.s32.totalorder %s28, 1
      %p198 = por %p196, %p197
      %p200 = scmp.ne.s32.totalorder %s185, %s199
      %p201 = scmp.eq.s32.totalorder %s28, 0
      %p202 = por %p200, %p201
      %s203 = ssub.s32 %s22, %s29
      %p204 = scmp.eq.s32.totalorder %s203, 0
      %s206 = sadd.s32 %s205, 1
      %s207 = scalar_select %p204, %s205, %s206
      %p210 = pneg %p204
      %p211 = scmp.eq.s32.totalorder %s22, 1
      %p212 = por %p210, %p211
      %p213 = scmp.ne.s32.totalorder %s205, %s208
      %p214 = scmp.eq.s32.totalorder %s22, 0
      %p215 = por %p213, %p214
      %p216 = scmp.ne.s32.totalorder %s205, %s208
      %p217 = scmp.eq.s32.totalorder %s27, 1
      %p218 = por %p216, %p217
      %p219 = scmp.ne.s32.totalorder %s208, %s209
      %p220 = scmp.eq.s32.totalorder %s27, 0
      %p221 = por %p219, %p220
      %p222 = scmp.ne.s32.totalorder %s208, %s209
      %p223 = scmp.eq.s32.totalorder %s28, 1
      %p224 = por %p222, %p223
      %p226 = scmp.ne.s32.totalorder %s209, %s225
      %p227 = scmp.eq.s32.totalorder %s28, 0
      %p228 = por %p226, %p227
      %p229 = scmp.le.s32.totalorder 1, %s22
      %p230 = scmp.lt.s32.totalorder %s22, 3
      %p231 = pnand %p229, %p230
      %p232 = pneg %p231
      // Predicated region
      $region9: #{tpu_custom_call.1} parent=5 // pred_check
        _
      $region10: #{tpu_custom_call.1} parent=5 // pred_check_branch
        %234 = sbr.rel (%p231) target = $region12
      $region11: #{tpu_custom_call.1} parent=5 // pred_region
        %s235 = ssub.s32 %s22, 1
        // Predicated region
        $region13: #{tpu_custom_call.1} parent=11 // pred_check
          %p236 = pneg %p69
        $region14: #{tpu_custom_call.1} parent=11 // pred_check_branch
          %238 = sbr.rel (%p236) target = $region16
        $region15: #{tpu_custom_call.1} parent=11 // pred_region
          %s240 = ssub.s32 3072, 3072
          %241 = vsyncadd [#allocation6], %s240
          %s242 = sshll.u32 [#allocation5], 4
          %s243 = int_to_ptr.vmem [resolvable:$true] %s242
          %248 = dma.hbm_to_vmem [thread:$0]  %s1, 3072, %s243, [#allocation6], 192, 192, 12
        $region16: #{tpu_custom_call.1} parent=11 // pred_fallthru
          _
        // Predicated region
        $region17: #{tpu_custom_call.1} parent=11 // pred_check
          %p249 = pneg %p90
        $region18: #{tpu_custom_call.1} parent=11 // pred_check_branch
          %251 = sbr.rel (%p249) target = $region20
        $region19: #{tpu_custom_call.1} parent=11 // pred_region
          %s253 = ssub.s32 48, 48
          %254 = vsyncadd [#allocation6], %s253
          %s256 = sshll.u32 [#allocation7], 4
          %s257 = int_to_ptr.vmem [resolvable:$true] %s256
          %259 = dma.hbm_to_vmem [thread:$0]  %s2, 48, %s257, [#allocation6]
        $region20: #{tpu_custom_call.1} parent=11 // pred_fallthru
          _
        // Predicated region
        $region21: #{tpu_custom_call.1} parent=11 // pred_check
          %p260 = pneg %p111
        $region22: #{tpu_custom_call.1} parent=11 // pred_check_branch
          %262 = sbr.rel (%p260) target = $region24
        $region23: #{tpu_custom_call.1} parent=11 // pred_region
          %s264 = ssub.s32 1024, 1024
          %265 = vsyncadd [#allocation9], %s264
          %s266 = sshll.u32 [#allocation8], 4
          %s267 = int_to_ptr.vmem [resolvable:$true] %s266
          %272 = dma.hbm_to_vmem [thread:$0]  %s3, 1024, %s267, [#allocation9], 64, 64, 4
        $region24: #{tpu_custom_call.1} parent=11 // pred_fallthru
          _
        // Predicated region
        $region25: #{tpu_custom_call.1} parent=11 // pred_check
          %p273 = pneg %p132
        $region26: #{tpu_custom_call.1} parent=11 // pred_check_branch
          %275 = sbr.rel (%p273) target = $region28
        $region27: #{tpu_custom_call.1} parent=11 // pred_region
          _
        $region28: #{tpu_custom_call.1} parent=11 // pred_fallthru
          _
        // Predicated region
        $region29: #{tpu_custom_call.1} parent=11 // pred_check
          %p276 = pneg %p153
        $region30: #{tpu_custom_call.1} parent=11 // pred_check_branch
          %278 = sbr.rel (%p276) target = $region32
        $region31: #{tpu_custom_call.1} parent=11 // pred_region
          _
        $region32: #{tpu_custom_call.1} parent=11 // pred_fallthru
          _
        // Predicated region
        $region33: #{tpu_custom_call.1} parent=11 // pred_check
          %p279 = pneg %p174
        $region34: #{tpu_custom_call.1} parent=11 // pred_check_branch
          %281 = sbr.rel (%p279) target = $region36
        $region35: #{tpu_custom_call.1} parent=11 // pred_region
          _
        $region36: #{tpu_custom_call.1} parent=11 // pred_fallthru
          _
        // Predicated region
        $region37: #{tpu_custom_call.1} parent=11 // pred_check
          %p282 = pneg %p195
        $region38: #{tpu_custom_call.1} parent=11 // pred_check_branch
          %284 = sbr.rel (%p282) target = $region40
        $region39: #{tpu_custom_call.1} parent=11 // pred_region
          _
        $region40: #{tpu_custom_call.1} parent=11 // pred_fallthru
          _
      $region12: #{tpu_custom_call.1} parent=5 // pred_fallthru
        _
      %p285 = scmp.lt.s32.totalorder %s22, 2
      // Predicated region
      $region41: #{tpu_custom_call.1} parent=5 // pred_check
        %p286 = pneg %p285
      $region42: #{tpu_custom_call.1} parent=5 // pred_check_branch
        %288 = sbr.rel (%p286) target = $region44
      $region43: #{tpu_custom_call.1} parent=5 // pred_region
        // Predicated region
        $region45: #{tpu_custom_call.1} parent=43 // pred_check
          %p289 = pneg %p42
        $region46: #{tpu_custom_call.1} parent=43 // pred_check_branch
          %291 = sbr.rel (%p289) target = $region48
        $region47: #{tpu_custom_call.1} parent=43 // pred_region
          %s292 = sand.u32 %s32, 1
          %s293 = scalar_lea.sflag [#allocation3], %s292
          %s294 = sand.u32 %s32, 1
          %s295 = smul.addr %s294, 16
          %s296 = scalar_lea.vmem [#allocation2], %s295
          %s297 = smul.u32 2, %s22
          %s299 = ssub.s32 256, 256
          %300 = vsyncadd %s293, %s299
          %s301 = smul.addr %s297, 128
          %s302 = scalar_lea.hbm %s0, %s301
          %s303 = sshll.u32 %s296, 4
          %s304 = int_to_ptr.vmem [resolvable:$true] %s303
          %309 = dma.hbm_to_vmem [thread:$0]  %s302, 256, %s304, %s293, 128, 128, 8
        $region48: #{tpu_custom_call.1} parent=43 // pred_fallthru
          _
      $region44: #{tpu_custom_call.1} parent=5 // pred_fallthru
        _
      %p310 = scmp.le.s32.totalorder 1, %s22
      %p311 = scmp.lt.s32.totalorder %s22, 3
      %p312 = pnand %p310, %p311
      %p313 = pneg %p312
      // Predicated region
      $region49: #{tpu_custom_call.1} parent=5 // pred_check
        _
      $region50: #{tpu_custom_call.1} parent=5 // pred_check_branch
        %315 = sbr.rel (%p312) target = $region52
      $region51: #{tpu_custom_call.1} parent=5 // pred_region
        %s316 = ssub.s32 %s22, 1
        %s317 = sand.u32 %s35, 1
        %s318 = scalar_lea.sflag [#allocation3], %s317
        %s319 = sand.u32 %s35, 1
        %s320 = smul.addr %s319, 16
        %s321 = scalar_lea.vmem [#allocation2], %s320
        // Predicated region
        $region53: #{tpu_custom_call.1} parent=51 // pred_check
          %p322 = pneg %p48
        $region54: #{tpu_custom_call.1} parent=51 // pred_check_branch
          %324 = sbr.rel (%p322) target = $region56
        $region55: #{tpu_custom_call.1} parent=51 // pred_region
          %325 = dma.done %s318, 256
        $region56: #{tpu_custom_call.1} parent=51 // pred_fallthru
          _
        // Predicated region
        $region57: #{tpu_custom_call.1} parent=51 // pred_check
          %p326 = pneg %p69
        $region58: #{tpu_custom_call.1} parent=51 // pred_check_branch
          %328 = sbr.rel (%p326) target = $region60
        $region59: #{tpu_custom_call.1} parent=51 // pred_region
          %329 = dma.done [#allocation6], 3072
        $region60: #{tpu_custom_call.1} parent=51 // pred_fallthru
          _
        // Predicated region
        $region61: #{tpu_custom_call.1} parent=51 // pred_check
          %p330 = pneg %p90
        $region62: #{tpu_custom_call.1} parent=51 // pred_check_branch
          %332 = sbr.rel (%p330) target = $region64
        $region63: #{tpu_custom_call.1} parent=51 // pred_region
          %333 = dma.done [#allocation6], 48
        $region64: #{tpu_custom_call.1} parent=51 // pred_fallthru
          _
        // Predicated region
        $region65: #{tpu_custom_call.1} parent=51 // pred_check
          %p334 = pneg %p111
        $region66: #{tpu_custom_call.1} parent=51 // pred_check_branch
          %336 = sbr.rel (%p334) target = $region68
        $region67: #{tpu_custom_call.1} parent=51 // pred_region
          %337 = dma.done [#allocation9], 1024
        $region68: #{tpu_custom_call.1} parent=51 // pred_fallthru
          _
        %s338 = sand.u32 %s35, 1
        %s339 = scalar_lea.sflag [#allocation3], %s338
        %s340 = sand.u32 %s35, 1
        %s341 = smul.addr %s340, 16
        %s342 = scalar_lea.vmem [#allocation2], %s341
        %p343 = pneg %p48
        %p344 = pneg %p45
        %p345 = pneg %p69
        %p346 = pneg %p66
        %p347 = pneg %p90
        %p348 = pneg %p87
        %p349 = pneg %p111
        %p350 = pneg %p108
        %p351 = pneg %p132
        %p352 = pneg %p129
        %p353 = pneg %p153
        %p354 = pneg %p150
        %p355 = pneg %p174
        %p356 = pneg %p171
        %p357 = pneg %p195
        %p358 = pneg %p192
        %p359 = pneg %p221
        %p360 = pneg %p218
        %s361 = sand.u32 %s208, 1
        %s362 = scalar_lea.sflag [#allocation4], %s361
        %s363 = sand.u32 %s208, 1
        %s364 = smul.addr %s363, 16
        %s365 = scalar_lea.vmem [#allocation10], %s364
        %s366 = smul.u32 2, %s27
        %s367 = smul.u32 2, %s27
        %v369 = vld [vmem:[%s321] sm:$0xff]
        %v370 = vld [vmem:[%s321 + $0x8] sm:$0xff]
        %v371 = vpack.c.bf16 %v370, %v369
        %v372 = vld [vmem:[#allocation5] sm:$0xff]
        %v373 = vld [vmem:[#allocation5 + $0x8] sm:$0xf]
        %v374 = vld [vmem:[#allocation5 + $0xc] sm:$0xff]
        %v375 = vld [vmem:[#allocation5 + $0x14] sm:$0xf]
        %v376 = vld [vmem:[#allocation5 + $0x18] sm:$0xff]
        %v377 = vld [vmem:[#allocation5 + $0x20] sm:$0xf]
        %v378 = vld [vmem:[#allocation5 + $0x24] sm:$0xff]
        %v379 = vld [vmem:[#allocation5 + $0x2c] sm:$0xf]
        %v380 = vld [vmem:[#allocation5 + $0x30] sm:$0xff]
        %v381 = vld [vmem:[#allocation5 + $0x38] sm:$0xf]
        %v382 = vld [vmem:[#allocation5 + $0x3c] sm:$0xff]
        %v383 = vld [vmem:[#allocation5 + $0x44] sm:$0xf]
        %v384 = vld [vmem:[#allocation5 + $0x48] sm:$0xff]
        %v385 = vld [vmem:[#allocation5 + $0x50] sm:$0xf]
        %v386 = vld [vmem:[#allocation5 + $0x54] sm:$0xff]
        %v387 = vld [vmem:[#allocation5 + $0x5c] sm:$0xf]
        %v388 = vld [vmem:[#allocation5 + $0x60] sm:$0xff]
        %v389 = vld [vmem:[#allocation5 + $0x68] sm:$0xf]
        %v390 = vld [vmem:[#allocation5 + $0x6c] sm:$0xff]
        %v391 = vld [vmem:[#allocation5 + $0x74] sm:$0xf]
        %v392 = vld [vmem:[#allocation5 + $0x78] sm:$0xff]
        %v393 = vld [vmem:[#allocation5 + $0x80] sm:$0xf]
        %v394 = vld [vmem:[#allocation5 + $0x84] sm:$0xff]
        %v395 = vld [vmem:[#allocation5 + $0x8c] sm:$0xf]
        %v396 = vld [vmem:[#allocation5 + $0x90] sm:$0xff]
        %v397 = vld [vmem:[#allocation5 + $0x98] sm:$0xf]
        %v398 = vld [vmem:[#allocation5 + $0x9c] sm:$0xff]
        %v399 = vld [vmem:[#allocation5 + $0xa4] sm:$0xf]
        %v400 = vld [vmem:[#allocation5 + $0xa8] sm:$0xff]
        %v401 = vld [vmem:[#allocation5 + $0xb0] sm:$0xf]
        %v402 = vld [vmem:[#allocation5 + $0xb4] sm:$0xff]
        %v403 = vld [vmem:[#allocation5 + $0xbc] sm:$0xf]
        %v404 = vld [vmem:[#allocation7] sm:$0x7]
        %v406 = vlaneseq
        %v407 = vshrl.u32 %v406, 7
        %v408 = vsub.s32 0, %v407
        %v409 = vrot.slane %v404, %v408
        %v410 = vlaneseq
        %v411 = vshrl.u32 %v410, 7
        %v412 = vsub.s32 1, %v411
        %v413 = vrot.slane %v404, %v412
        %v414 = vlaneseq
        %v415 = vshrl.u32 %v414, 7
        %v416 = vsub.s32 2, %v415
        %v417 = vrot.slane %v404, %v416
        %v453 = vunpack.c.l.b16 %v372
        %v454 = vunpack.c.h.b16 %v372
        %v455 = vunpack.c.l.b16 %v373
        %v456 = vunpack.c.l.b16 %v374
        %v457 = vunpack.c.h.b16 %v374
        %v458 = vunpack.c.l.b16 %v375
        %v459 = vunpack.c.l.b16 %v376
        %v460 = vunpack.c.h.b16 %v376
        %v461 = vunpack.c.l.b16 %v377
        %v462 = vunpack.c.l.b16 %v378
        %v463 = vunpack.c.h.b16 %v378
        %v464 = vunpack.c.l.b16 %v379
        %v465 = vunpack.c.l.b16 %v380
        %v466 = vunpack.c.h.b16 %v380
        %v467 = vunpack.c.l.b16 %v381
        %v468 = vunpack.c.l.b16 %v382
        %v469 = vunpack.c.h.b16 %v382
        %v470 = vunpack.c.l.b16 %v383
        %v471 = vunpack.c.l.b16 %v384
        %v472 = vunpack.c.h.b16 %v384
        %v473 = vunpack.c.l.b16 %v385
        %v474 = vunpack.c.l.b16 %v386
        %v475 = vunpack.c.h.b16 %v386
        %v476 = vunpack.c.l.b16 %v387
        %v477 = vunpack.c.l.b16 %v388
        %v478 = vunpack.c.h.b16 %v388
        %v479 = vunpack.c.l.b16 %v389
        %v480 = vunpack.c.l.b16 %v390
        %v481 = vunpack.c.h.b16 %v390
        %v482 = vunpack.c.l.b16 %v391
        %v483 = vunpack.c.l.b16 %v392
        %v484 = vunpack.c.h.b16 %v392
        %v485 = vunpack.c.l.b16 %v393
        %v486 = vunpack.c.l.b16 %v394
        %v487 = vunpack.c.h.b16 %v394
        %v488 = vunpack.c.l.b16 %v395
        %v489 = vunpack.c.l.b16 %v396
        %v490 = vunpack.c.h.b16 %v396
        %v491 = vunpack.c.l.b16 %v397
        %v492 = vunpack.c.l.b16 %v398
        %v493 = vunpack.c.h.b16 %v398
        %v494 = vunpack.c.l.b16 %v399
        %v495 = vunpack.c.l.b16 %v400
        %v496 = vunpack.c.h.b16 %v400
        %v497 = vunpack.c.l.b16 %v401
        %v498 = vunpack.c.l.b16 %v402
        %v499 = vunpack.c.h.b16 %v402
        %v500 = vunpack.c.l.b16 %v403
        %v501 = vpack.c.b16 %v456, %v453
        %v502 = vpack.c.b16 %v457, %v454
        %v503 = vpack.c.b16 %v458, %v455
        %v504 = vpack.c.b16 %v462, %v459
        %v505 = vpack.c.b16 %v463, %v460
        %v506 = vpack.c.b16 %v464, %v461
        %v507 = vpack.c.b16 %v468, %v465
        %v508 = vpack.c.b16 %v469, %v466
        %v509 = vpack.c.b16 %v470, %v467
        %v510 = vpack.c.b16 %v474, %v471
        %v511 = vpack.c.b16 %v475, %v472
        %v512 = vpack.c.b16 %v476, %v473
        %v513 = vpack.c.b16 %v480, %v477
        %v514 = vpack.c.b16 %v481, %v478
        %v515 = vpack.c.b16 %v482, %v479
        %v516 = vpack.c.b16 %v486, %v483
        %v517 = vpack.c.b16 %v487, %v484
        %v518 = vpack.c.b16 %v488, %v485
        %v519 = vpack.c.b16 %v492, %v489
        %v520 = vpack.c.b16 %v493, %v490
        %v521 = vpack.c.b16 %v494, %v491
        %v522 = vpack.c.b16 %v498, %v495
        %v523 = vpack.c.b16 %v499, %v496
        %v524 = vpack.c.b16 %v500, %v497
        %549 = vmatprep.subr.bf16.mxu0 %v523
        %550 = vmatpush1.bf16.msra.mxu0 %v522
        %551 = vmatprep.subr.bf16.mxu0 %v520
        %552 = vmatpush1.bf16.msra.mxu0 %v519
        %553 = vmatprep.subr.bf16.mxu0 %v517
        %554 = vmatpush1.bf16.msra.mxu0 %v516
        %555 = vmatprep.subr.bf16.mxu0 %v514
        %556 = vmatpush1.bf16.msra.mxu0 %v513
        %557 = vmatprep.subr.bf16.mxu0 %v511
        %558 = vmatpush1.bf16.msra.mxu0 %v510
        %559 = vmatprep.subr.bf16.mxu0 %v508
        %560 = vmatpush1.bf16.msra.mxu0 %v507
        %561 = vmatprep.subr.bf16.mxu0 %v505
        %562 = vmatpush1.bf16.msra.mxu0 %v504
        %563 = vmatprep.subr.bf16.mxu0 %v502
        %564 = vmatpush1.bf16.msra.mxu0 %v501
        %565 = vmatprep.subr.bf16.mxu0 0
        %566 = vmatpush2.bf16.msra.mxu0 0
        %567 = vmatprep.subr.bf16.mxu0 0
        %568 = vmatpush2.bf16.msra.mxu0 0
        %569 = vmatprep.subr.bf16.mxu0 0
        %570 = vmatpush2.bf16.msra.mxu0 0
        %571 = vmatprep.subr.bf16.mxu0 0
        %572 = vmatpush2.bf16.msra.mxu0 0
        %573 = vmatprep.subr.bf16.mxu0 0
        %574 = vmatpush2.bf16.msra.mxu0 0
        %575 = vmatprep.subr.bf16.mxu0 0
        %576 = vmatpush2.bf16.msra.mxu0 0
        %577 = vmatprep.subr.bf16.mxu0 0
        %578 = vmatpush2.bf16.msra.mxu0 0
        %579 = vmatprep.subr.bf16.mxu0 0
        %580 = vmatpush2.bf16.msra.mxu0 0
        %581 = vmatprep.mubr.bf16.mxu0 0
        %582 = vmatmul.mubr.bf16.gmra.mxu0 %v371
        %v583 = vpop.f32.mrf.mxu0
        %v584 = vadd.f32 %v409, %v583
        %v585 = vpop.f32.mrf.mxu0
        %v586 = vadd.f32 %v413, %v585
        %v587 = vpop.f32.mrf.mxu0
        %v588 = vadd.f32 %v409, %v587
        %v589 = vpop.f32.mrf.mxu0
        %v590 = vadd.f32 %v413, %v589
        %591 = vdwg.mxu0
        %592 = vmatprep.subr.bf16.mxu0 0
        %593 = vmatpush1.bf16.msra.mxu0 %v524
        %594 = vmatprep.subr.bf16.mxu0 0
        %595 = vmatpush1.bf16.msra.mxu0 %v521
        %596 = vmatprep.subr.bf16.mxu0 0
        %597 = vmatpush1.bf16.msra.mxu0 %v518
        %598 = vmatprep.subr.bf16.mxu0 0
        %599 = vmatpush1.bf16.msra.mxu0 %v515
        %600 = vmatprep.subr.bf16.mxu0 0
        %601 = vmatpush1.bf16.msra.mxu0 %v512
        %602 = vmatprep.subr.bf16.mxu0 0
        %603 = vmatpush1.bf16.msra.mxu0 %v509
        %604 = vmatprep.subr.bf16.mxu0 0
        %605 = vmatpush1.bf16.msra.mxu0 %v506
        %606 = vmatprep.subr.bf16.mxu0 0
        %607 = vmatpush1.bf16.msra.mxu0 %v503
        %608 = vmatprep.subr.bf16.mxu0 0
        %609 = vmatpush2.bf16.msra.mxu0 0
        %610 = vmatprep.subr.bf16.mxu0 0
        %611 = vmatpush2.bf16.msra.mxu0 0
        %612 = vmatprep.subr.bf16.mxu0 0
        %613 = vmatpush2.bf16.msra.mxu0 0
        %614 = vmatprep.subr.bf16.mxu0 0
        %615 = vmatpush2.bf16.msra.mxu0 0
        %616 = vmatprep.subr.bf16.mxu0 0
        %617 = vmatpush2.bf16.msra.mxu0 0
        %618 = vmatprep.subr.bf16.mxu0 0
        %619 = vmatpush2.bf16.msra.mxu0 0
        %620 = vmatprep.subr.bf16.mxu0 0
        %621 = vmatpush2.bf16.msra.mxu0 0
        %622 = vmatprep.subr.bf16.mxu0 0
        %623 = vmatpush2.bf16.msra.mxu0 0
        %624 = vmatprep.mubr.bf16.mxu0 0
        %625 = vmatmul.mubr.bf16.gmra.mxu0 %v371
        %v626 = vpop.f32.mrf.mxu0
        %v627 = vadd.f32 %v417, %v626
        %v628 = vpop.f32.mrf.mxu0
        %v629 = vpop.f32.mrf.mxu0
        %v630 = vadd.f32 %v417, %v629
        %v631 = vpop.f32.mrf.mxu0
        %632 = vdwg.mxu0
        %v633 = vld [vmem:[%s5] sm:$0xff]
        %v634 = vld [vmem:[%s5 + $0x8] sm:$0xff]
        %v635 = vld [vmem:[%s5 + $0x10] sm:$0xff]
        %v636 = vld [vmem:[%s5 + $0x18] sm:$0xff]
        %v637 = vld [vmem:[%s5 + $0x20] sm:$0xff]
        %v638 = vld [vmem:[%s5 + $0x28] sm:$0xff]
        %v639 = vld [vmem:[%s5 + $0x30] sm:$0xff]
        %v640 = vld [vmem:[%s5 + $0x38] sm:$0xff]
        %v641 = vld [vmem:[%s5 + $0x40] sm:$0xff]
        %v642 = vld [vmem:[%s5 + $0x48] sm:$0xff]
        %v643 = vld [vmem:[%s5 + $0x50] sm:$0xff]
        %v644 = vld [vmem:[%s5 + $0x58] sm:$0xff]
        %v645 = vld [vmem:[%s5 + $0x60] sm:$0xff]
        %v646 = vld [vmem:[%s5 + $0x68] sm:$0xff]
        %v647 = vld [vmem:[%s5 + $0x70] sm:$0xff]
        %v648 = vld [vmem:[%s5 + $0x78] sm:$0xff]
        %v649 = vmul.f32 %v586, %v633
        %v650 = vmul.f32 %v590, %v634
        %v651 = vmul.f32 %v586, %v635
        %v652 = vmul.f32 %v590, %v636
        %v653 = vmul.f32 %v586, %v637
        %v654 = vmul.f32 %v590, %v638
        %v655 = vmul.f32 %v586, %v639
        %v656 = vmul.f32 %v590, %v640
        %v657 = vmul.f32 %v586, %v641
        %v658 = vmul.f32 %v590, %v642
        %v659 = vmul.f32 %v586, %v643
        %v660 = vmul.f32 %v590, %v644
        %v661 = vmul.f32 %v586, %v645
        %v662 = vmul.f32 %v590, %v646
        %v663 = vmul.f32 %v586, %v647
        %v664 = vmul.f32 %v590, %v648
        %v665 = vpack.c.bf16 %v650, %v649
        %v666 = vpack.c.bf16 %v652, %v651
        %v667 = vpack.c.bf16 %v654, %v653
        %v668 = vpack.c.bf16 %v656, %v655
        %v669 = vpack.c.bf16 %v658, %v657
        %v670 = vpack.c.bf16 %v660, %v659
        %v671 = vpack.c.bf16 %v662, %v661
        %v672 = vpack.c.bf16 %v664, %v663
        %v673 = vmul.f32 %v627, %v633
        %v674 = vmul.f32 %v630, %v634
        %v675 = vmul.f32 %v627, %v635
        %v676 = vmul.f32 %v630, %v636
        %v677 = vmul.f32 %v627, %v637
        %v678 = vmul.f32 %v630, %v638
        %v679 = vmul.f32 %v627, %v639
        %v680 = vmul.f32 %v630, %v640
        %v681 = vmul.f32 %v627, %v641
        %v682 = vmul.f32 %v630, %v642
        %v683 = vmul.f32 %v627, %v643
        %v684 = vmul.f32 %v630, %v644
        %v685 = vmul.f32 %v627, %v645
        %v686 = vmul.f32 %v630, %v646
        %v687 = vmul.f32 %v627, %v647
        %v688 = vmul.f32 %v630, %v648
        %v689 = vpack.c.bf16 %v674, %v673
        %v690 = vpack.c.bf16 %v676, %v675
        %v691 = vpack.c.bf16 %v678, %v677
        %v692 = vpack.c.bf16 %v680, %v679
        %v693 = vpack.c.bf16 %v682, %v681
        %v694 = vpack.c.bf16 %v684, %v683
        %v695 = vpack.c.bf16 %v686, %v685
        %v696 = vpack.c.bf16 %v688, %v687
        %v697 = vpack.c.bf16 %v588, %v584
        %698 = vmatprep.subr.bf16.mxu0 0
        %699 = vmatpush1.bf16.xpose.msra.mxu0 %v672
        %700 = vmatprep.subr.bf16.mxu0 0
        %701 = vmatpush1.bf16.xpose.msra.mxu0 %v671
        %702 = vmatprep.subr.bf16.mxu0 0
        %703 = vmatpush1.bf16.xpose.msra.mxu0 %v670
        %704 = vmatprep.subr.bf16.mxu0 0
        %705 = vmatpush1.bf16.xpose.msra.mxu0 %v669
        %706 = vmatprep.subr.bf16.mxu0 0
        %707 = vmatpush1.bf16.xpose.msra.mxu0 %v668
        %708 = vmatprep.subr.bf16.mxu0 0
        %709 = vmatpush1.bf16.xpose.msra.mxu0 %v667
        %710 = vmatprep.subr.bf16.mxu0 0
        %711 = vmatpush1.bf16.xpose.msra.mxu0 %v666
        %712 = vmatprep.subr.bf16.mxu0 0
        %713 = vmatpush1.bf16.xpose.msra.mxu0 %v665
        %714 = vmatprep.subr.bf16.mxu0 0
        %715 = vmatpush2.bf16.xpose.msra.mxu0 0
        %716 = vmatprep.subr.bf16.mxu0 0
        %717 = vmatpush2.bf16.xpose.msra.mxu0 0
        %718 = vmatprep.subr.bf16.mxu0 0
        %719 = vmatpush2.bf16.xpose.msra.mxu0 0
        %720 = vmatprep.subr.bf16.mxu0 0
        %721 = vmatpush2.bf16.xpose.msra.mxu0 0
        %722 = vmatprep.subr.bf16.mxu0 0
        %723 = vmatpush2.bf16.xpose.msra.mxu0 0
        %724 = vmatprep.subr.bf16.mxu0 0
        %725 = vmatpush2.bf16.xpose.msra.mxu0 0
        %726 = vmatprep.subr.bf16.mxu0 0
        %727 = vmatpush2.bf16.xpose.msra.mxu0 0
        %728 = vmatprep.subr.bf16.mxu0 0
        %729 = vmatpush2.bf16.xpose.msra.mxu0 0
        %730 = vmatprep.mubr.bf16.mxu0 0
        %731 = vmatmul.mubr.bf16.gmra.mxu0 %v697
        %v732 = vpop.f32.mrf.mxu0
        %v733 = vadd.f32 0.0, %v732
        %v734 = vpop.f32.mrf.mxu0
        %v735 = vpop.f32.mrf.mxu0
        %v736 = vadd.f32 0.0, %v735
        %v737 = vpop.f32.mrf.mxu0
        %738 = vdwg.mxu0
        %739 = vmax.xlane.f32.xlu0 %v733
        %v740 = vpop.xlane.xlu0 %739
        %741 = vmax.xlane.f32.xlu0 %v736
        %v742 = vpop.xlane.xlu0 %741
        %v743 = vsub.f32 %v733, %v740
        %v744 = vsub.f32 %v736, %v742
        %v745 = vmul.f32 %v743, 1.442695
        %v746 = vpow.pop %v745
        %v747 = vmul.f32 %v744, 1.442695
        %v748 = vpow.pop %v747
        %v749 = vld [vmem:[%s6] sm:$0xff]
        %v750 = vld [vmem:[%s6 + $0x8] sm:$0xff]
        %v751 = vld [vmem:[%s6 + $0x10] sm:$0xff]
        %v752 = vld [vmem:[%s6 + $0x18] sm:$0xff]
        %v753 = vld [vmem:[%s6 + $0x20] sm:$0xff]
        %v754 = vld [vmem:[%s6 + $0x28] sm:$0xff]
        %v755 = vld [vmem:[%s6 + $0x30] sm:$0xff]
        %v756 = vld [vmem:[%s6 + $0x38] sm:$0xff]
        %v757 = vld [vmem:[%s6 + $0x40] sm:$0xff]
        %v758 = vld [vmem:[%s6 + $0x48] sm:$0xff]
        %v759 = vld [vmem:[%s6 + $0x50] sm:$0xff]
        %v760 = vld [vmem:[%s6 + $0x58] sm:$0xff]
        %v761 = vld [vmem:[%s6 + $0x60] sm:$0xff]
        %v762 = vld [vmem:[%s6 + $0x68] sm:$0xff]
        %v763 = vld [vmem:[%s6 + $0x70] sm:$0xff]
        %v764 = vld [vmem:[%s6 + $0x78] sm:$0xff]
        %765 = vmatprep.subr.mxu0 0.0
        %766 = vmatpush1.msra.mxu0 %v764
        %767 = vmatprep.subr.mxu0 0.0
        %768 = vmatpush1.msra.mxu0 %v763
        %769 = vmatprep.subr.mxu0 0.0
        %770 = vmatpush1.msra.mxu0 %v762
        %771 = vmatprep.subr.mxu0 0.0
        %772 = vmatpush1.msra.mxu0 %v761
        %773 = vmatprep.subr.mxu0 0.0
        %774 = vmatpush1.msra.mxu0 %v760
        %775 = vmatprep.subr.mxu0 0.0
        %776 = vmatpush1.msra.mxu0 %v759
        %777 = vmatprep.subr.mxu0 0.0
        %778 = vmatpush1.msra.mxu0 %v758
        %779 = vmatprep.subr.mxu0 0.0
        %780 = vmatpush1.msra.mxu0 %v757
        %781 = vmatprep.subr.mxu0 0.0
        %782 = vmatpush1.msra.mxu0 %v756
        %783 = vmatprep.subr.mxu0 0.0
        %784 = vmatpush1.msra.mxu0 %v755
        %785 = vmatprep.subr.mxu0 0.0
        %786 = vmatpush1.msra.mxu0 %v754
        %787 = vmatprep.subr.mxu0 0.0
        %788 = vmatpush1.msra.mxu0 %v753
        %789 = vmatprep.subr.mxu0 0.0
        %790 = vmatpush1.msra.mxu0 %v752
        %791 = vmatprep.subr.mxu0 0.0
        %792 = vmatpush1.msra.mxu0 %v751
        %793 = vmatprep.subr.mxu0 0.0
        %794 = vmatpush1.msra.mxu0 %v750
        %795 = vmatprep.subr.mxu0 0.0
        %796 = vmatpush1.msra.mxu0 %v749
        %797 = vmatprep.subr.mxu0 0.0
        %798 = vmatpush2.msra.mxu0 0.0
        %799 = vmatprep.subr.mxu0 0.0
        %800 = vmatpush2.msra.mxu0 0.0
        %801 = vmatprep.subr.mxu0 0.0
        %802 = vmatpush2.msra.mxu0 0.0
        %803 = vmatprep.subr.mxu0 0.0
        %804 = vmatpush2.msra.mxu0 0.0
        %805 = vmatprep.subr.mxu0 0.0
        %806 = vmatpush2.msra.mxu0 0.0
        %807 = vmatprep.subr.mxu0 0.0
        %808 = vmatpush2.msra.mxu0 0.0
        %809 = vmatprep.subr.mxu0 0.0
        %810 = vmatpush2.msra.mxu0 0.0
        %811 = vmatprep.subr.mxu0 0.0
        %812 = vmatpush2.msra.mxu0 0.0
        %813 = vmatprep.subr.mxu0 0.0
        %814 = vmatpush2.msra.mxu0 0.0
        %815 = vmatprep.subr.mxu0 0.0
        %816 = vmatpush2.msra.mxu0 0.0
        %817 = vmatprep.subr.mxu0 0.0
        %818 = vmatpush2.msra.mxu0 0.0
        %819 = vmatprep.subr.mxu0 0.0
        %820 = vmatpush2.msra.mxu0 0.0
        %821 = vmatprep.subr.mxu0 0.0
        %822 = vmatpush2.msra.mxu0 0.0
        %823 = vmatprep.subr.mxu0 0.0
        %824 = vmatpush2.msra.mxu0 0.0
        %825 = vmatprep.subr.mxu0 0.0
        %826 = vmatpush2.msra.mxu0 0.0
        %827 = vmatprep.subr.mxu0 0.0
        %828 = vmatpush2.msra.mxu0 0.0
        %829 = vmatprep.mubr.f32.mxu0 0.0
        %830 = vmatmul.mubr.f32.gmra.mxu0 %v746
        %v831 = vpop.f32.mrf.mxu0
        %v832 = vadd.f32 0.0, %v831
        %v833 = vpop.f32.mrf.mxu0
        %834 = vmatprep.mubr.f32.mxu0 0.0
        %835 = vmatmul.mubr.f32.gmra.mxu0 %v748
        %v836 = vpop.f32.mrf.mxu0
        %v837 = vadd.f32 0.0, %v836
        %v838 = vpop.f32.mrf.mxu0
        %839 = vdwg.mxu0
        %v840 = vld [vmem:[%s7] sm:$0xff]
        %vm841 = vcmask 64512
        %v843 = vsel %vm841, %v832, 0
        %v846 = vsel %vm841, %v837, 0
        %848 = vmatprep.subr.mxu0 0.0
        %849 = vmatpush1.msra.mxu0 0.0
        %850 = vmatprep.subr.mxu0 0.0
        %851 = vmatpush1.msra.mxu0 0.0
        %852 = vmatprep.subr.mxu0 0.0
        %853 = vmatpush1.msra.mxu0 0.0
        %854 = vmatprep.subr.mxu0 0.0
        %855 = vmatpush1.msra.mxu0 0.0
        %856 = vmatprep.subr.mxu0 0.0
        %857 = vmatpush1.msra.mxu0 0.0
        %858 = vmatprep.subr.mxu0 0.0
        %859 = vmatpush1.msra.mxu0 0.0
        %860 = vmatprep.subr.mxu0 0.0
        %861 = vmatpush1.msra.mxu0 0.0
        %862 = vmatprep.subr.mxu0 0.0
        %863 = vmatpush1.msra.mxu0 0.0
        %864 = vmatprep.subr.mxu0 0.0
        %865 = vmatpush1.msra.mxu0 0.0
        %866 = vmatprep.subr.mxu0 0.0
        %867 = vmatpush1.msra.mxu0 0.0
        %868 = vmatprep.subr.mxu0 0.0
        %869 = vmatpush1.msra.mxu0 0.0
        %870 = vmatprep.subr.mxu0 0.0
        %871 = vmatpush1.msra.mxu0 0.0
        %872 = vmatprep.subr.mxu0 0.0
        %873 = vmatpush1.msra.mxu0 0.0
        %874 = vmatprep.subr.mxu0 0.0
        %875 = vmatpush1.msra.mxu0 0.0
        %876 = vmatprep.subr.mxu0 0.0
        %877 = vmatpush1.msra.mxu0 0.0
        %878 = vmatprep.subr.mxu0 0.0
        %879 = vmatpush1.msra.mxu0 %v840
        %880 = vmatprep.subr.mxu0 0.0
        %881 = vmatpush2.msra.mxu0 0.0
        %882 = vmatprep.subr.mxu0 0.0
        %883 = vmatpush2.msra.mxu0 0.0
        %884 = vmatprep.subr.mxu0 0.0
        %885 = vmatpush2.msra.mxu0 0.0
        %886 = vmatprep.subr.mxu0 0.0
        %887 = vmatpush2.msra.mxu0 0.0
        %888 = vmatprep.subr.mxu0 0.0
        %889 = vmatpush2.msra.mxu0 0.0
        %890 = vmatprep.subr.mxu0 0.0
        %891 = vmatpush2.msra.mxu0 0.0
        %892 = vmatprep.subr.mxu0 0.0
        %893 = vmatpush2.msra.mxu0 0.0
        %894 = vmatprep.subr.mxu0 0.0
        %895 = vmatpush2.msra.mxu0 0.0
        %896 = vmatprep.subr.mxu0 0.0
        %897 = vmatpush2.msra.mxu0 0.0
        %898 = vmatprep.subr.mxu0 0.0
        %899 = vmatpush2.msra.mxu0 0.0
        %900 = vmatprep.subr.mxu0 0.0
        %901 = vmatpush2.msra.mxu0 0.0
        %902 = vmatprep.subr.mxu0 0.0
        %903 = vmatpush2.msra.mxu0 0.0
        %904 = vmatprep.subr.mxu0 0.0
        %905 = vmatpush2.msra.mxu0 0.0
        %906 = vmatprep.subr.mxu0 0.0
        %907 = vmatpush2.msra.mxu0 0.0
        %908 = vmatprep.subr.mxu0 0.0
        %909 = vmatpush2.msra.mxu0 0.0
        %910 = vmatprep.subr.mxu0 0.0
        %911 = vmatpush2.msra.mxu0 0.0
        %912 = vmatprep.mubr.f32.mxu0 0.0
        %913 = vmatmul.mubr.f32.gmra.mxu0 %v843
        %v914 = vpop.f32.mrf.mxu0
        %v915 = vadd.f32 0.0, %v914
        %v916 = vpop.f32.mrf.mxu0
        %917 = vmatprep.mubr.f32.mxu0 0.0
        %918 = vmatmul.mubr.f32.gmra.mxu0 %v846
        %v919 = vpop.f32.mrf.mxu0
        %v920 = vadd.f32 0.0, %v919
        %v921 = vpop.f32.mrf.mxu0
        %922 = vdwg.mxu0
        %v923 = vmax.f32 %v915, 1e-20
        %v924 = vmax.f32 %v920, 1e-20
        %v925 = vrcp.pop %v923
        %v926 = vrcp.pop %v924
        %v927 = vmul.f32 %v746, %v925
        %v928 = vmul.f32 %v748, %v926
        %v929 = vpack.c.bf16 %v928, %v927
        %930 = vmatprep.subr.bf16.mxu0 0
        %931 = vmatpush1.bf16.msra.mxu0 %v696
        %932 = vmatprep.subr.bf16.mxu0 0
        %933 = vmatpush1.bf16.msra.mxu0 %v695
        %934 = vmatprep.subr.bf16.mxu0 0
        %935 = vmatpush1.bf16.msra.mxu0 %v694
        %936 = vmatprep.subr.bf16.mxu0 0
        %937 = vmatpush1.bf16.msra.mxu0 %v693
        %938 = vmatprep.subr.bf16.mxu0 0
        %939 = vmatpush1.bf16.msra.mxu0 %v692
        %940 = vmatprep.subr.bf16.mxu0 0
        %941 = vmatpush1.bf16.msra.mxu0 %v691
        %942 = vmatprep.subr.bf16.mxu0 0
        %943 = vmatpush1.bf16.msra.mxu0 %v690
        %944 = vmatprep.subr.bf16.mxu0 0
        %945 = vmatpush1.bf16.msra.mxu0 %v689
        %946 = vmatprep.subr.bf16.mxu0 0
        %947 = vmatpush2.bf16.msra.mxu0 0
        %948 = vmatprep.subr.bf16.mxu0 0
        %949 = vmatpush2.bf16.msra.mxu0 0
        %950 = vmatprep.subr.bf16.mxu0 0
        %951 = vmatpush2.bf16.msra.mxu0 0
        %952 = vmatprep.subr.bf16.mxu0 0
        %953 = vmatpush2.bf16.msra.mxu0 0
        %954 = vmatprep.subr.bf16.mxu0 0
        %955 = vmatpush2.bf16.msra.mxu0 0
        %956 = vmatprep.subr.bf16.mxu0 0
        %957 = vmatpush2.bf16.msra.mxu0 0
        %958 = vmatprep.subr.bf16.mxu0 0
        %959 = vmatpush2.bf16.msra.mxu0 0
        %960 = vmatprep.subr.bf16.mxu0 0
        %961 = vmatpush2.bf16.msra.mxu0 0
        %962 = vmatprep.mubr.bf16.mxu0 0
        %963 = vmatmul.mubr.bf16.gmra.mxu0 %v929
        %v964 = vpop.f32.mrf.mxu0
        %v965 = vadd.f32 0.0, %v964
        %v966 = vpop.f32.mrf.mxu0
        %v967 = vpop.f32.mrf.mxu0
        %v968 = vadd.f32 0.0, %v967
        %v969 = vpop.f32.mrf.mxu0
        %970 = vdwg.mxu0
        %v971 = vpack.c.bf16 %v968, %v965
        %v972 = vld [vmem:[#allocation8] sm:$0xf]
        %v973 = vld [vmem:[#allocation8 + $0x4] sm:$0xf]
        %v974 = vld [vmem:[#allocation8 + $0x8] sm:$0xf]
        %v975 = vld [vmem:[#allocation8 + $0xc] sm:$0xf]
        %v976 = vld [vmem:[#allocation8 + $0x10] sm:$0xf]
        %v977 = vld [vmem:[#allocation8 + $0x14] sm:$0xf]
        %v978 = vld [vmem:[#allocation8 + $0x18] sm:$0xf]
        %v979 = vld [vmem:[#allocation8 + $0x1c] sm:$0xf]
        %v980 = vld [vmem:[#allocation8 + $0x20] sm:$0xf]
        %v981 = vld [vmem:[#allocation8 + $0x24] sm:$0xf]
        %v982 = vld [vmem:[#allocation8 + $0x28] sm:$0xf]
        %v983 = vld [vmem:[#allocation8 + $0x2c] sm:$0xf]
        %v984 = vld [vmem:[#allocation8 + $0x30] sm:$0xf]
        %v985 = vld [vmem:[#allocation8 + $0x34] sm:$0xf]
        %v986 = vld [vmem:[#allocation8 + $0x38] sm:$0xf]
        %v987 = vld [vmem:[#allocation8 + $0x3c] sm:$0xf]
        %v988 = vld [vmem:[%s4] sm:$0x1]
        %v990 = vlaneseq
        %v991 = vshrl.u32 %v990, 7
        %v992 = vsub.s32 0, %v991
        %v993 = vrot.slane %v988, %v992
        %v1011 = vunpack.c.l.b16 %v972
        %v1012 = vunpack.c.l.b16 %v973
        %v1013 = vunpack.c.l.b16 %v974
        %v1014 = vunpack.c.l.b16 %v975
        %v1015 = vunpack.c.l.b16 %v976
        %v1016 = vunpack.c.l.b16 %v977
        %v1017 = vunpack.c.l.b16 %v978
        %v1018 = vunpack.c.l.b16 %v979
        %v1019 = vunpack.c.l.b16 %v980
        %v1020 = vunpack.c.l.b16 %v981
        %v1021 = vunpack.c.l.b16 %v982
        %v1022 = vunpack.c.l.b16 %v983
        %v1023 = vunpack.c.l.b16 %v984
        %v1024 = vunpack.c.l.b16 %v985
        %v1025 = vunpack.c.l.b16 %v986
        %v1026 = vunpack.c.l.b16 %v987
        %v1027 = vpack.c.b16 %v1012, %v1011
        %v1028 = vpack.c.b16 %v1014, %v1013
        %v1029 = vpack.c.b16 %v1016, %v1015
        %v1030 = vpack.c.b16 %v1018, %v1017
        %v1031 = vpack.c.b16 %v1020, %v1019
        %v1032 = vpack.c.b16 %v1022, %v1021
        %v1033 = vpack.c.b16 %v1024, %v1023
        %v1034 = vpack.c.b16 %v1026, %v1025
        %1043 = vmatprep.subr.bf16.mxu0 0
        %1044 = vmatpush1.bf16.msra.mxu0 %v1034
        %1045 = vmatprep.subr.bf16.mxu0 0
        %1046 = vmatpush1.bf16.msra.mxu0 %v1033
        %1047 = vmatprep.subr.bf16.mxu0 0
        %1048 = vmatpush1.bf16.msra.mxu0 %v1032
        %1049 = vmatprep.subr.bf16.mxu0 0
        %1050 = vmatpush1.bf16.msra.mxu0 %v1031
        %1051 = vmatprep.subr.bf16.mxu0 0
        %1052 = vmatpush1.bf16.msra.mxu0 %v1030
        %1053 = vmatprep.subr.bf16.mxu0 0
        %1054 = vmatpush1.bf16.msra.mxu0 %v1029
        %1055 = vmatprep.subr.bf16.mxu0 0
        %1056 = vmatpush1.bf16.msra.mxu0 %v1028
        %1057 = vmatprep.subr.bf16.mxu0 0
        %1058 = vmatpush1.bf16.msra.mxu0 %v1027
        %1059 = vmatprep.subr.bf16.mxu0 0
        %1060 = vmatpush2.bf16.msra.mxu0 0
        %1061 = vmatprep.subr.bf16.mxu0 0
        %1062 = vmatpush2.bf16.msra.mxu0 0
        %1063 = vmatprep.subr.bf16.mxu0 0
        %1064 = vmatpush2.bf16.msra.mxu0 0
        %1065 = vmatprep.subr.bf16.mxu0 0
        %1066 = vmatpush2.bf16.msra.mxu0 0
        %1067 = vmatprep.subr.bf16.mxu0 0
        %1068 = vmatpush2.bf16.msra.mxu0 0
        %1069 = vmatprep.subr.bf16.mxu0 0
        %1070 = vmatpush2.bf16.msra.mxu0 0
        %1071 = vmatprep.subr.bf16.mxu0 0
        %1072 = vmatpush2.bf16.msra.mxu0 0
        %1073 = vmatprep.subr.bf16.mxu0 0
        %1074 = vmatpush2.bf16.msra.mxu0 0
        %1075 = vmatprep.mubr.bf16.mxu0 0
        %1076 = vmatmul.mubr.bf16.gmra.mxu0 %v971
        %v1077 = vpop.f32.mrf.mxu0
        %v1078 = vadd.f32 %v993, %v1077
        %v1079 = vpop.f32.mrf.mxu0
        %v1080 = vpop.f32.mrf.mxu0
        %v1081 = vadd.f32 %v993, %v1080
        %v1082 = vpop.f32.mrf.mxu0
        %1083 = vdwg.mxu0
        %1084 = vst [vmem:[%s365] sm:$0xff] %v1078
        %1085 = vst [vmem:[%s365 + $0x8] sm:$0xff] %v1081
        %s1086 = sand.u32 %s208, 1
        %s1087 = scalar_lea.sflag [#allocation4], %s1086
        %s1088 = sand.u32 %s208, 1
        %s1089 = smul.addr %s1088, 16
        %s1090 = scalar_lea.vmem [#allocation10], %s1089
        // Predicated region
        $region69: #{tpu_custom_call.1} parent=51 // pred_check
          %p1091 = pneg %p218
        $region70: #{tpu_custom_call.1} parent=51 // pred_check_branch
          %1093 = sbr.rel (%p1091) target = $region72
        $region71: #{tpu_custom_call.1} parent=51 // pred_region
          %s1094 = smul.u32 2, %s27
          %s1096 = ssub.s32 256, 256
          %1097 = vsyncadd %s1087, %s1096
          %s1098 = smul.addr %s1094, 128
          %s1099 = scalar_lea.hbm %s8, %s1098
          %s1100 = sshll.u32 %s1090, 4
          %s1101 = int_to_ptr.vmem [resolvable:$true] %s1100
          %1106 = dma.vmem_to_hbm [thread:$0]  %s1101, 256, %s1099, %s1087, 128, 128, 8
        $region72: #{tpu_custom_call.1} parent=51 // pred_fallthru
          _
      $region52: #{tpu_custom_call.1} parent=5 // pred_fallthru
        _
      %p1107 = scmp.le.s32.totalorder 2, %s22
      // Predicated region
      $region73: #{tpu_custom_call.1} parent=5 // pred_check
        %p1108 = pneg %p1107
      $region74: #{tpu_custom_call.1} parent=5 // pred_check_branch
        %1110 = sbr.rel (%p1108) target = $region76
      $region75: #{tpu_custom_call.1} parent=5 // pred_region
        %s1111 = ssub.s32 %s22, 2
        // Predicated region
        $region77: #{tpu_custom_call.1} parent=75 // pred_check
          %p1112 = pneg %p224
        $region78: #{tpu_custom_call.1} parent=75 // pred_check_branch
          %1114 = sbr.rel (%p1112) target = $region80
        $region79: #{tpu_custom_call.1} parent=75 // pred_region
          %s1115 = sand.u32 %s209, 1
          %s1116 = scalar_lea.sflag [#allocation4], %s1115
          %s1117 = sand.u32 %s209, 1
          %s1118 = smul.addr %s1117, 16
          %s1119 = scalar_lea.vmem [#allocation10], %s1118
          %1120 = dma.done %s1116, 256
        $region80: #{tpu_custom_call.1} parent=75 // pred_fallthru
          _
      $region76: #{tpu_custom_call.1} parent=5 // pred_fallthru
        _
    $region6: #{tpu_custom_call.1} parent=1 // loop_footer
      %s26 = sadd.s32 1, %s22
    $region7: #{tpu_custom_call.1} parent=1 // loop_footer_branch
      %21 = sbr.rel target = $region3
    $region8: #{tpu_custom_call.1} parent=1 // loop_exit
      _
    %1121 = vsyncpa [#allocation3], 1
    %s1122 = scalar_lea.sflag [#allocation3], 1
    %1123 = vsyncpa %s1122, 1
    %1124 = vsyncpa [#allocation6], 1
    %1125 = vsyncpa [#allocation9], 1
    %1126 = vsyncpa [#allocation4], 1
    %s1127 = scalar_lea.sflag [#allocation4], 1
    %1128 = vsyncpa %s1127, 1

</llo_original>
